<compile_context>
chip_gen: v7x
topology: tpu7x:2x2x1
jax: 0.10.0
libtpu: 0.0.40
codegen_flags: <defaults>
</compile_context>

<pallas_src>
from functools import partial
import math

import jax
import jax.numpy as jnp
from jax.experimental import pallas as pl
from jax.experimental.pallas import tpu as pltpu


def _cdiv(a, b):
    return -(-a // b)


def _pool_matrix(kd, kh, kw, H, W, G, dtype=jnp.bfloat16):
    """(G*kd*H*W, G*Hh*Wh) block-diagonal 0/1 matrix.

    Right-multiplying a kernel row (G depth-windows, each flattened as
    (kd, H, W)) by this matrix yields, for each of the G windows, its Hh*Wh
    non-overlapping (kd, kh, kw) window sums.  Exactly representable in bf16.
    """
    Hh, Wh = H // kh, W // kw
    r = jnp.arange(G * kd * H * W, dtype=jnp.int32)
    rg = r // (kd * H * W)
    rh = (r % (H * W)) // W
    rw = r % W
    c = jnp.arange(G * Hh * Wh, dtype=jnp.int32)
    cg = c // (Hh * Wh)
    ch = (c % (Hh * Wh)) // Wh
    cw = c % Wh
    m = ((rg[:, None] == cg[None, :])
         & ((rh // kh)[:, None] == ch[None, :])
         & ((rw // kw)[:, None] == cw[None, :]))
    return m.astype(dtype)


def _softpool_kernel(pool_ref, x_ref, o_ref, *, chunk):
    """One grid step: (TB, G*kd*H*W) input rows -> (TB, G*Hh*Wh) output rows."""
    tb = x_ref.shape[0]
    n_chunks = tb // chunk

    def process(r0):
        x = x_ref[pl.ds(r0, chunk), :].astype(jnp.float32)     # (chunk, L)
        # TODO(synk): bf16 exp on v6e/v7x if profiling shows the EUP binding
        # after the DMA fixes; v5e's EUP has no bf16 so keep f32 by default.
        e = jnp.exp(x)                                          # EUP
        n = x * e                                               # VPU
        # bf16 hi+lo split of the summands: the 0/1 pool matrix is exact in
        # bf16, so two native MXU passes recover ~f32 accuracy (no
        # Precision.HIGHEST 6-pass emulation, no VALU splitter ops).
        n_hi = n.astype(jnp.bfloat16)
        n_lo = (n - n_hi.astype(jnp.float32)).astype(jnp.bfloat16)
        e_hi = e.astype(jnp.bfloat16)
        e_lo = (e - e_hi.astype(jnp.float32)).astype(jnp.bfloat16)
        # Single dot per chunk: num/den (hi & lo) stacked along the M axis.
        m = jnp.concatenate([n_hi, n_lo, e_hi, e_lo], axis=0)   # (4*chunk, L)
        p = jnp.dot(m, pool_ref[...],
                    preferred_element_type=jnp.float32)         # MXU
        num = p[0 * chunk:1 * chunk] + p[1 * chunk:2 * chunk]
        den = p[2 * chunk:3 * chunk] + p[3 * chunk:4 * chunk]
        # den is a sum of exponentials (> 0): approx reciprocal (EUP) is safe.
        out = num * pl.reciprocal(den, approx=True)
        o_ref[pl.ds(r0, chunk), :] = out.astype(o_ref.dtype)

    if n_chunks == 1:
        process(0)
    else:
        # Stream the block in row chunks: keeps intermediate live ranges small
        # and lets the vld of chunk i+1 overlap the EUP/MXU work of chunk i.
        @pl.loop(0, n_chunks)
        def _(ci):
            process(pl.multiple_of(ci * chunk, chunk))


def _pick_block_rows(n_rows, row_bytes, budget_bytes):
    """Rows per grid step.

    As large as the VMEM budget allows (big blocks amortize the ~0.35us/step
    overhead and keep DMAs long), sublane-dense (multiple of 8), and with an
    even number of >= 2 grid steps where possible so v7x's two TensorCores
    split the "parallel" axis evenly.
    """
    tb = max(1, min(n_rows, budget_bytes // max(row_bytes, 1)))
    if n_rows <= 8:
        return n_rows, 1                       # tiny problem: one full block
    tb = max(tb & ~7, 8)                       # sublane-dense block rows
    steps = _cdiv(n_rows, tb)
    if steps < 2:
        steps = 2                              # give both v7x TCs work
    elif steps % 2:
        steps += 1                             # even split across the 2 TCs
    tb = _cdiv(n_rows, steps)
    tb += (-tb) % 8
    return tb, _cdiv(n_rows, tb)


def softpool3d(x, kernel_size=(2, 2, 2), stride=(2, 2, 2),
               block_target_bytes=8 << 20):
    """SoftPool forward for NCDHW input; stride must equal kernel_size."""
    kd, kh, kw = kernel_size
    assert tuple(stride) == tuple(kernel_size), (
        "Pallas SoftPool implements the module default: non-overlapping "
        "windows (stride == kernel_size).")
    # TODO(synk): overlapping pooling (stride != kernel) / MaxPool pool_op variants.
    N, C, D, H, W = x.shape
    assert D % kd == 0 and H % kh == 0 and W % kw == 0, "spatial dims must divide"
    Dh, Hh, Wh = D // kd, H // kh, W // kw
    HWo = Hh * Wh
    L1 = kd * H * W                           # one depth-window, flattened
    B = N * C * Dh                            # number of depth-windows

    # Group G depth-windows per kernel row so the output row (G*Hh*Wh) is a
    # multiple of 128: unmasked lane-dense stores + contiguous writeback.
    G = 128 // math.gcd(128, HWo)
    while G > 1 and (G * L1) * (G * HWo) * 2 > (4 << 20):
        G //= 2                               # keep the pool matrix small
    L = G * L1
    O = G * HWo
    pool_bytes = L * O * 2
    assert pool_bytes <= (8 << 20), (
        "H*W too large for the fused pooling matrix")
    # TODO(synk): separable (W-then-H) MXU pooling path for large H*W.

    row_bytes = L * x.dtype.itemsize
    tb, steps = _pick_block_rows(_cdiv(B, G), row_bytes, block_target_bytes)
    rows = tb * steps                         # padded row count (>= ceil(B/G))

    xr = x.reshape(B, L1)                     # free contiguous reshape
    pad = rows * G - B
    if pad:
        # Zero rows are safe: num = 0, den = kd*kh*kw -> out = 0; dropped below.
        xr = jnp.pad(xr, ((0, pad), (0, 0)))
    xr = xr.reshape(rows, L)                  # free contiguous reshape

    pool = _pool_matrix(kd, kh, kw, H, W, G)

    chunk = tb
    for c in (32, 16, 8):
        if tb % c == 0:
            chunk = c
            break

    # Double-buffered input + output + pool matrix + per-chunk temporaries.
    need = (2 * tb * row_bytes + 2 * tb * O * 4 + 2 * pool_bytes
            + 12 * chunk * L * 4 + (2 << 20))
    vmem_limit = min(max(need, 32 << 20), 48 << 20)

    out = pl.pallas_call(
        partial(_softpool_kernel, chunk=chunk),
        out_shape=jax.ShapeDtypeStruct((rows, O), x.dtype),
        grid=(steps,),
        in_specs=[pl.BlockSpec((L, O), lambda i: (0, 0)),     # pool matrix (constant block)
                  pl.BlockSpec((tb, L), lambda i: (i, 0))],   # input rows
        out_specs=pl.BlockSpec((tb, O), lambda i: (i, 0)),
        compiler_params=pltpu.CompilerParams(
            dimension_semantics=("parallel",),
            vmem_limit_bytes=vmem_limit),
    )(pool, xr)

    out = out.reshape(rows * G, HWo)[:B]      # drop padded windows (if any)
    return out.reshape(N, C, Dh, Hh, Wh)      # free contiguous reshape


def softpool3d_ref(x, kernel_size=(2, 2, 2)):
    """Pure-JAX reference matching the PyTorch module (for the self-check)."""
    kd, kh, kw = kernel_size
    e = jnp.exp(x)
    num = x * e

    def avg_pool(v):
        N, C, D, H, W = v.shape
        v = v.reshape(N, C, D // kd, kd, H // kh, kh, W // kw, kw)
        return v.mean(axis=(3, 5, 7))

    return avg_pool(num) / avg_pool(e)


if __name__ == "__main__":
    key = jax.random.PRNGKey(0)
    # SoftPool(AvgPool3d, kernel_size=(2,2,2), stride=(2,2,2)) on NCDHW input.
    N, C, D, H, W = 2, 4, 8, 16, 16
    x = jax.random.normal(key, (N, C, D, H, W), jnp.float32)

    fwd = jax.jit(softpool3d)
    y = fwd(x)
    jax.block_until_ready(y)

    assert y.shape == (N, C, D // 2, H // 2, W // 2), y.shape
    y_ref = softpool3d_ref(x)
    # Error budget: ~1e-4 from the bf16 hi+lo MXU summands + O(1e-3) from the
    # approximate (EUP) reciprocal -- comfortably inside 2e-2.
    err = float(jnp.max(jnp.abs(y - y_ref)))
    assert err < 2e-2, f"max abs error vs reference: {err}"
    print("KERNEL_OK")
</pallas_src>

<mosaic_0001>
module attributes {stable_mosaic.version = 11 : i64} {
  func.func @_softpool_kernel(%arg0: i32, %arg1: memref<1024x128xbf16, #tpu.memory_space<vmem>>, %arg2: memref<8x1024xf32, #tpu.memory_space<vmem>>, %arg3: memref<8x128xf32, #tpu.memory_space<vmem>>) attributes {dimension_semantics = [#tpu.dimension_semantics<parallel>], iteration_bounds = array<i64: 2>, scalar_prefetch = 0 : i64, scratch_operands = 0 : i64, tpu.core_type = #tpu.core_type<tc>, window_params = [{pipeline_mode = #tpu.pipeline_mode<synchronous>, transform_indices = @transform_0, window_bounds = array<i64: 1024, 128>}, {transform_indices = @transform_1, window_bounds = array<i64: 8, 1024>}, {transform_indices = @transform_2, window_bounds = array<i64: 8, 128>}]} {
    %c0 = arith.constant 0 : index
    %c0_0 = arith.constant 0 : index
    %0 = vector.load %arg2[%c0, %c0_0] : memref<8x1024xf32, #tpu.memory_space<vmem>>, vector<8x1024xf32>
    %1 = math.exp %0 : vector<8x1024xf32>
    %2 = arith.mulf %0, %1 : vector<8x1024xf32>
    %3 = arith.truncf %2 : vector<8x1024xf32> to vector<8x1024xbf16>
    %4 = arith.extf %3 : vector<8x1024xbf16> to vector<8x1024xf32>
    %5 = arith.subf %2, %4 : vector<8x1024xf32>
    %6 = arith.truncf %5 : vector<8x1024xf32> to vector<8x1024xbf16>
    %7 = arith.truncf %1 : vector<8x1024xf32> to vector<8x1024xbf16>
    %8 = arith.extf %7 : vector<8x1024xbf16> to vector<8x1024xf32>
    %9 = arith.subf %1, %8 : vector<8x1024xf32>
    %10 = arith.truncf %9 : vector<8x1024xf32> to vector<8x1024xbf16>
    %11 = tpu.concatenate %3, %6, %7, %10 in 0 : vector<8x1024xbf16>, vector<8x1024xbf16>, vector<8x1024xbf16>, vector<8x1024xbf16> -> vector<32x1024xbf16>
    %c0_1 = arith.constant 0 : index
    %c0_2 = arith.constant 0 : index
    %12 = vector.load %arg1[%c0_1, %c0_2] : memref<1024x128xbf16, #tpu.memory_space<vmem>>, vector<1024x128xbf16>
    %cst = arith.constant dense<0.000000e+00> : vector<32x128xf32>
    %13 = tpu.matmul %11, %12, %cst {dimension_numbers = #tpu.dot_dimension_numbers<[1], [0], [0], [1], [0, 0, 1, 1], [], []>} : vector<32x1024xbf16>, vector<1024x128xbf16>, vector<32x128xf32> -> vector<32x128xf32>
    %14 = vector.extract_strided_slice %13 {offsets = [0, 0], sizes = [8, 128], strides = [1, 1]} : vector<32x128xf32> to vector<8x128xf32>
    %15 = vector.extract_strided_slice %13 {offsets = [8, 0], sizes = [8, 128], strides = [1, 1]} : vector<32x128xf32> to vector<8x128xf32>
    %16 = arith.addf %14, %15 : vector<8x128xf32>
    %17 = vector.extract_strided_slice %13 {offsets = [16, 0], sizes = [8, 128], strides = [1, 1]} : vector<32x128xf32> to vector<8x128xf32>
    %18 = vector.extract_strided_slice %13 {offsets = [24, 0], sizes = [8, 128], strides = [1, 1]} : vector<32x128xf32> to vector<8x128xf32>
    %19 = arith.addf %17, %18 : vector<8x128xf32>
    %20 = tpu.reciprocal %19 {approx = true} : vector<8x128xf32> -> vector<8x128xf32>
    %21 = arith.mulf %16, %20 : vector<8x128xf32>
    %c0_3 = arith.constant 0 : index
    %c0_4 = arith.constant 0 : index
    %22 = vector.load %arg3[%c0_3, %c0_4] : memref<8x128xf32, #tpu.memory_space<vmem>>, vector<8x128xf32>
    tpu.vector_store %arg3[%c0_3, %c0_4], %21 {strides = array<i32>} : memref<8x128xf32, #tpu.memory_space<vmem>>, vector<8x128xf32>,
    return
  }
  func.func @transform_0(%arg0: i32) -> (i32, i32) {
    %c0_i32 = arith.constant 0 : i32
    %c0_i32_0 = arith.constant 0 : i32
    %c0_i32_1 = arith.constant 0 : i32
    return %c0_i32, %c0_i32_0 : i32, i32
  }
  func.func @transform_1(%arg0: i32) -> (i32, i32) {
    %c0_i32 = arith.constant 0 : i32
    %c0_i32_0 = arith.constant 0 : i32
    return %arg0, %c0_i32 : i32, i32
  }
  func.func @transform_2(%arg0: i32) -> (i32, i32) {
    %c0_i32 = arith.constant 0 : i32
    %c0_i32_0 = arith.constant 0 : i32
    return %arg0, %c0_i32 : i32, i32
  }
}

</mosaic_0001>

<llo_original>
// kernel: softpool3d.1
$region0: #{softpool3d.1}
  #allocation0 [shape = 'u32[]', space=smem, size = 0x4, offset = 0x4, fixed_abs, tag = 'smem constant byte address 0x4 - core index']
  #allocation1 [shape = 'u32[144,128]{1,0:T(1,128)}', space=vmem, size = 0x12000, scoped, tag = 'internal scratch']
  %s0 = inlined_call_operand.vmem [shape: bf16[1024,128], index: 0, kind: input, shape index: {}]
  %s1 = inlined_call_operand.vmem [shape: f32[16,1024], index: 1, kind: input, shape index: {}]
  %s2 = inlined_call_operand.vmem [shape: f32[16,128], index: 2, kind: output, shape index: {}]
  %s3 = sld [smem:[#allocation0]]
  $region41: #{softpool3d.1} parent=0
    _
  %s5 = ssub.s32 1, %s3
  %s6 = scalar_select 0, %s5, %s3
  loop: start=0, step=1, limit=4
  $region2: #{softpool3d.1} parent=0 // loop_pre_header
    _
  $region3: #{softpool3d.1} parent=0 // loop_header
    %s8 = sphi 0, %s12
    %p9 = scmp.ge.s32.totalorder %s8, 4
    %s16 = sphi 0, %s16
    %s18 = sphi 0, %s16
    %s19 = sphi 0, %s18
    %s33 = sphi 0, %s19
    %s39 = sphi 0, %s41
    %s42 = sphi 0, %s39
    %s43 = sphi 0, %s42
    %s59 = sphi 0, %s43
    %s65 = sphi 0, %s67
    %s68 = sphi 0, %s65
    %s69 = sphi 0, %s68
    %s85 = sphi 0, %s69
  $region4: #{softpool3d.1} parent=0 // loop_header_branch
    %11 = sbr.rel (%p9) target = $region8
  $region5: #{softpool3d.1} parent=0 // loop_body
    %s13 = ssub.s32 %s8, 1
    %s14 = ssub.s32 %s8, 2
    %s15 = sadd.s32 %s8, 1
    %s17 = sadd.s32 %s16, 1
    %p20 = scmp.eq.s32.totalorder %s8, 1
    %p21 = scmp.ne.s32.totalorder %s16, %s18
    %p22 = scmp.eq.s32.totalorder %s8, 0
    %p23 = por %p21, %p22
    %p24 = scmp.ne.s32.totalorder %s16, %s18
    %p25 = scmp.eq.s32.totalorder %s13, 1
    %p26 = por %p24, %p25
    %p27 = scmp.ne.s32.totalorder %s18, %s19
    %p28 = scmp.eq.s32.totalorder %s13, 0
    %p29 = por %p27, %p28
    %p30 = scmp.ne.s32.totalorder %s18, %s19
    %p31 = scmp.eq.s32.totalorder %s14, 1
    %p32 = por %p30, %p31
    %p34 = scmp.ne.s32.totalorder %s19, %s33
    %p35 = scmp.eq.s32.totalorder %s14, 0
    %p36 = por %p34, %p35
    %s37 = ssub.s32 %s8, %s15
    %p38 = scmp.eq.s32.totalorder %s37, 0
    %s40 = sadd.s32 %s39, 1
    %s41 = scalar_select %p38, %s39, %s40
    %p44 = pneg %p38
    %p45 = scmp.eq.s32.totalorder %s8, 1
    %p46 = por %p44, %p45
    %p47 = scmp.ne.s32.totalorder %s39, %s42
    %p48 = scmp.eq.s32.totalorder %s8, 0
    %p49 = por %p47, %p48
    %p50 = scmp.ne.s32.totalorder %s39, %s42
    %p51 = scmp.eq.s32.totalorder %s13, 1
    %p52 = por %p50, %p51
    %p53 = scmp.ne.s32.totalorder %s42, %s43
    %p54 = scmp.eq.s32.totalorder %s13, 0
    %p55 = por %p53, %p54
    %p56 = scmp.ne.s32.totalorder %s42, %s43
    %p57 = scmp.eq.s32.totalorder %s14, 1
    %p58 = por %p56, %p57
    %p60 = scmp.ne.s32.totalorder %s43, %s59
    %p61 = scmp.eq.s32.totalorder %s14, 0
    %p62 = por %p60, %p61
    %s63 = ssub.s32 %s8, %s15
    %p64 = scmp.eq.s32.totalorder %s63, 0
    %s66 = sadd.s32 %s65, 1
    %s67 = scalar_select %p64, %s65, %s66
    %p70 = pneg %p64
    %p71 = scmp.eq.s32.totalorder %s8, 1
    %p72 = por %p70, %p71
    %p73 = scmp.ne.s32.totalorder %s65, %s68
    %p74 = scmp.eq.s32.totalorder %s8, 0
    %p75 = por %p73, %p74
    %p76 = scmp.ne.s32.totalorder %s65, %s68
    %p77 = scmp.eq.s32.totalorder %s13, 1
    %p78 = por %p76, %p77
    %p79 = scmp.ne.s32.totalorder %s68, %s69
    %p80 = scmp.eq.s32.totalorder %s13, 0
    %p81 = por %p79, %p80
    %p82 = scmp.ne.s32.totalorder %s68, %s69
    %p83 = scmp.eq.s32.totalorder %s14, 1
    %p84 = por %p82, %p83
    %p86 = scmp.ne.s32.totalorder %s69, %s85
    %p87 = scmp.eq.s32.totalorder %s14, 0
    %p88 = por %p86, %p87
    %p89 = scmp.le.s32.totalorder 1, %s8
    %p90 = scmp.lt.s32.totalorder %s8, 3
    %p91 = pnand %p89, %p90
    %p92 = pneg %p91
    // Predicated region
    $region9: #{softpool3d.1} parent=5 // pred_check
      _
    $region10: #{softpool3d.1} parent=5 // pred_check_branch
      %94 = sbr.rel (%p91) target = $region12
    $region11: #{softpool3d.1} parent=5 // pred_region
      %s95 = ssub.s32 %s8, 1
      // Predicated region
      $region13: #{softpool3d.1} parent=11 // pred_check
        %p96 = pneg %p29
      $region14: #{softpool3d.1} parent=11 // pred_check_branch
        %98 = sbr.rel (%p96) target = $region16
      $region15: #{softpool3d.1} parent=11 // pred_region
        _
      $region16: #{softpool3d.1} parent=11 // pred_fallthru
        _
    $region12: #{softpool3d.1} parent=5 // pred_fallthru
      _
    %p99 = scmp.lt.s32.totalorder %s8, 2
    // Predicated region
    $region17: #{softpool3d.1} parent=5 // pred_check
      %p100 = pneg %p99
    $region18: #{softpool3d.1} parent=5 // pred_check_branch
      %102 = sbr.rel (%p100) target = $region20
    $region19: #{softpool3d.1} parent=5 // pred_region
      // Predicated region
      $region21: #{softpool3d.1} parent=19 // pred_check
        %p103 = pneg %p49
      $region22: #{softpool3d.1} parent=19 // pred_check_branch
        %105 = sbr.rel (%p103) target = $region24
      $region23: #{softpool3d.1} parent=19 // pred_region
        %p106 = scmp.lt.s32.totalorder %s8, 1
        %s107 = scalar_select %p106, %s8, 1
        %s108 = smul.addr %s107, 8
        %s109 = smul.addr %s108, 8
        %s110 = scalar_lea.vmem %s1, %s109
      $region24: #{softpool3d.1} parent=19 // pred_fallthru
        _
    $region20: #{softpool3d.1} parent=5 // pred_fallthru
      _
    %p111 = scmp.le.s32.totalorder 1, %s8
    %p112 = scmp.lt.s32.totalorder %s8, 3
    %p113 = pnand %p111, %p112
    %p114 = pneg %p113
    // Predicated region
    $region25: #{softpool3d.1} parent=5 // pred_check
      _
    $region26: #{softpool3d.1} parent=5 // pred_check_branch
      %116 = sbr.rel (%p113) target = $region28
    $region27: #{softpool3d.1} parent=5 // pred_region
      %s117 = ssub.s32 %s8, 1
      %p118 = pneg %p29
      %p119 = pneg %p26
      %p120 = scmp.lt.s32.totalorder %s13, 1
      %s121 = scalar_select %p120, %s13, 1
      %s122 = smul.addr %s121, 8
      %s123 = smul.addr %s122, 8
      %s124 = scalar_lea.vmem %s1, %s123
      %p125 = pneg %p55
      %p126 = pneg %p52
      %p127 = pneg %p81
      %p128 = pneg %p78
      %p129 = scmp.lt.s32.totalorder %s13, 1
      %s130 = scalar_select %p129, %s13, 1
      %s131 = smul.addr %s130, 8
      %s132 = scalar_lea.vmem %s2, %s131
      %p133 = scmp.lt.s32.totalorder %s13, 1
      %s134 = scalar_select %p133, %s13, 1
      %s135 = smul.addr %s134, 8
      %s136 = smul.addr %s135, 8
      %s137 = scalar_lea.vmem %s1, %s136
      %p138 = scmp.lt.s32.totalorder %s13, 1
      %s139 = scalar_select %p138, %s13, 1
      %s140 = smul.addr %s139, 8
      %s141 = scalar_lea.vmem %s2, %s140
      %v143 = vld [vmem:[%s137] sm:$0xff]
      %v144 = vld [vmem:[%s137 + $0x8] sm:$0xff]
      %v145 = vld [vmem:[%s137 + $0x10] sm:$0xff]
      %v146 = vld [vmem:[%s137 + $0x18] sm:$0xff]
      %v147 = vld [vmem:[%s137 + $0x20] sm:$0xff]
      %v148 = vld [vmem:[%s137 + $0x28] sm:$0xff]
      %v149 = vld [vmem:[%s137 + $0x30] sm:$0xff]
      %v150 = vld [vmem:[%s137 + $0x38] sm:$0xff]
      %v151 = vmul.f32 %v143, 1.442695
      %v152 = vpow.pop %v151
      %v153 = vmul.f32 %v144, 1.442695
      %v154 = vpow.pop %v153
      %v155 = vmul.f32 %v145, 1.442695
      %v156 = vpow.pop %v155
      %v157 = vmul.f32 %v146, 1.442695
      %v158 = vpow.pop %v157
      %v159 = vmul.f32 %v147, 1.442695
      %v160 = vpow.pop %v159
      %v161 = vmul.f32 %v148, 1.442695
      %v162 = vpow.pop %v161
      %v163 = vmul.f32 %v149, 1.442695
      %v164 = vpow.pop %v163
      %v165 = vmul.f32 %v150, 1.442695
      %v166 = vpow.pop %v165
      %v167 = vmul.f32 %v143, %v152
      %v168 = vmul.f32 %v144, %v154
      %v169 = vmul.f32 %v145, %v156
      %v170 = vmul.f32 %v146, %v158
      %v171 = vmul.f32 %v147, %v160
      %v172 = vmul.f32 %v148, %v162
      %v173 = vmul.f32 %v149, %v164
      %v174 = vmul.f32 %v150, %v166
      %v175 = vpack.c.bf16 %v167, %v167
      %v176 = vpack.c.bf16 %v168, %v168
      %v177 = vpack.c.bf16 %v169, %v169
      %v178 = vpack.c.bf16 %v170, %v170
      %v179 = vpack.c.bf16 %v171, %v171
      %v180 = vpack.c.bf16 %v172, %v172
      %v181 = vpack.c.bf16 %v173, %v173
      %v182 = vpack.c.bf16 %v174, %v174
      %v183 = vunpack.c.l.bf16 %v175
      %v184 = vunpack.c.l.bf16 %v176
      %v185 = vunpack.c.l.bf16 %v177
      %v186 = vunpack.c.l.bf16 %v178
      %v187 = vunpack.c.l.bf16 %v179
      %v188 = vunpack.c.l.bf16 %v180
      %v189 = vunpack.c.l.bf16 %v181
      %v190 = vunpack.c.l.bf16 %v182
      %v191 = vsub.f32 %v167, %v183
      %v192 = vsub.f32 %v168, %v184
      %v193 = vsub.f32 %v169, %v185
      %v194 = vsub.f32 %v170, %v186
      %v195 = vsub.f32 %v171, %v187
      %v196 = vsub.f32 %v172, %v188
      %v197 = vsub.f32 %v173, %v189
      %v198 = vsub.f32 %v174, %v190
      %v199 = vpack.c.bf16 %v191, %v191
      %v200 = vpack.c.bf16 %v192, %v192
      %v201 = vpack.c.bf16 %v193, %v193
      %v202 = vpack.c.bf16 %v194, %v194
      %v203 = vpack.c.bf16 %v195, %v195
      %v204 = vpack.c.bf16 %v196, %v196
      %v205 = vpack.c.bf16 %v197, %v197
      %v206 = vpack.c.bf16 %v198, %v198
      %v207 = vpack.c.bf16 %v152, %v152
      %v208 = vpack.c.bf16 %v154, %v154
      %v209 = vpack.c.bf16 %v156, %v156
      %v210 = vpack.c.bf16 %v158, %v158
      %v211 = vpack.c.bf16 %v160, %v160
      %v212 = vpack.c.bf16 %v162, %v162
      %v213 = vpack.c.bf16 %v164, %v164
      %v214 = vpack.c.bf16 %v166, %v166
      %v215 = vunpack.c.l.bf16 %v207
      %v216 = vunpack.c.l.bf16 %v208
      %v217 = vunpack.c.l.bf16 %v209
      %v218 = vunpack.c.l.bf16 %v210
      %v219 = vunpack.c.l.bf16 %v211
      %v220 = vunpack.c.l.bf16 %v212
      %v221 = vunpack.c.l.bf16 %v213
      %v222 = vunpack.c.l.bf16 %v214
      %v223 = vsub.f32 %v152, %v215
      %v224 = vsub.f32 %v154, %v216
      %v225 = vsub.f32 %v156, %v217
      %v226 = vsub.f32 %v158, %v218
      %v227 = vsub.f32 %v160, %v219
      %v228 = vsub.f32 %v162, %v220
      %v229 = vsub.f32 %v164, %v221
      %v230 = vsub.f32 %v166, %v222
      %v231 = vpack.c.bf16 %v223, %v223
      %v232 = vpack.c.bf16 %v224, %v224
      %v233 = vpack.c.bf16 %v225, %v225
      %v234 = vpack.c.bf16 %v226, %v226
      %v235 = vpack.c.bf16 %v227, %v227
      %v236 = vpack.c.bf16 %v228, %v228
      %v237 = vpack.c.bf16 %v229, %v229
      %v238 = vpack.c.bf16 %v230, %v230
      %v247 = vrot.slane %v199, 4
      %v248 = vrot.slane %v200, 4
      %v249 = vrot.slane %v201, 4
      %v250 = vrot.slane %v202, 4
      %v251 = vrot.slane %v203, 4
      %v252 = vrot.slane %v204, 4
      %v253 = vrot.slane %v205, 4
      %v254 = vrot.slane %v206, 4
      %v263 = vrot.slane %v231, 4
      %v264 = vrot.slane %v232, 4
      %v265 = vrot.slane %v233, 4
      %v266 = vrot.slane %v234, 4
      %v267 = vrot.slane %v235, 4
      %v268 = vrot.slane %v236, 4
      %v269 = vrot.slane %v237, 4
      %v270 = vrot.slane %v238, 4
      %vm271 = vcmask 1043456
      %v274 = vsel %vm271, %v175, %v247
      %v278 = vsel %vm271, %v176, %v248
      %v282 = vsel %vm271, %v177, %v249
      %v286 = vsel %vm271, %v178, %v250
      %v290 = vsel %vm271, %v179, %v251
      %v294 = vsel %vm271, %v180, %v252
      %v298 = vsel %vm271, %v181, %v253
      %v302 = vsel %vm271, %v182, %v254
      %v306 = vsel %vm271, %v207, %v263
      %v310 = vsel %vm271, %v208, %v264
      %v314 = vsel %vm271, %v209, %v265
      %v318 = vsel %vm271, %v210, %v266
      %v322 = vsel %vm271, %v211, %v267
      %v326 = vsel %vm271, %v212, %v268
      %v330 = vsel %vm271, %v213, %v269
      %v334 = vsel %vm271, %v214, %v270
      %v336 = vld [vmem:[%s0] sm:$0xf]
      %v337 = vld [vmem:[%s0 + $0x4] sm:$0xf]
      %v338 = vld [vmem:[%s0 + $0x8] sm:$0xf]
      %v339 = vld [vmem:[%s0 + $0xc] sm:$0xf]
      %v340 = vld [vmem:[%s0 + $0x10] sm:$0xf]
      %v341 = vld [vmem:[%s0 + $0x14] sm:$0xf]
      %v342 = vld [vmem:[%s0 + $0x18] sm:$0xf]
      %v343 = vld [vmem:[%s0 + $0x1c] sm:$0xf]
      %v344 = vld [vmem:[%s0 + $0x20] sm:$0xf]
      %v345 = vld [vmem:[%s0 + $0x24] sm:$0xf]
      %v346 = vld [vmem:[%s0 + $0x28] sm:$0xf]
      %v347 = vld [vmem:[%s0 + $0x2c] sm:$0xf]
      %v348 = vld [vmem:[%s0 + $0x30] sm:$0xf]
      %v349 = vld [vmem:[%s0 + $0x34] sm:$0xf]
      %v350 = vld [vmem:[%s0 + $0x38] sm:$0xf]
      %v351 = vld [vmem:[%s0 + $0x3c] sm:$0xf]
      %v352 = vld [vmem:[%s0 + $0x40] sm:$0xf]
      %v353 = vld [vmem:[%s0 + $0x44] sm:$0xf]
      %v354 = vld [vmem:[%s0 + $0x48] sm:$0xf]
      %v355 = vld [vmem:[%s0 + $0x4c] sm:$0xf]
      %v356 = vld [vmem:[%s0 + $0x50] sm:$0xf]
      %v357 = vld [vmem:[%s0 + $0x54] sm:$0xf]
      %v358 = vld [vmem:[%s0 + $0x58] sm:$0xf]
      %v359 = vld [vmem:[%s0 + $0x5c] sm:$0xf]
      %v360 = vld [vmem:[%s0 + $0x60] sm:$0xf]
      %v361 = vld [vmem:[%s0 + $0x64] sm:$0xf]
      %v362 = vld [vmem:[%s0 + $0x68] sm:$0xf]
      %v363 = vld [vmem:[%s0 + $0x6c] sm:$0xf]
      %v364 = vld [vmem:[%s0 + $0x70] sm:$0xf]
      %v365 = vld [vmem:[%s0 + $0x74] sm:$0xf]
      %v366 = vld [vmem:[%s0 + $0x78] sm:$0xf]
      %v367 = vld [vmem:[%s0 + $0x7c] sm:$0xf]
      %v368 = vld [vmem:[%s0 + $0x80] sm:$0xf]
      %v369 = vld [vmem:[%s0 + $0x84] sm:$0xf]
      %v370 = vld [vmem:[%s0 + $0x88] sm:$0xf]
      %v371 = vld [vmem:[%s0 + $0x8c] sm:$0xf]
      %v372 = vld [vmem:[%s0 + $0x90] sm:$0xf]
      %v373 = vld [vmem:[%s0 + $0x94] sm:$0xf]
      %v374 = vld [vmem:[%s0 + $0x98] sm:$0xf]
      %v375 = vld [vmem:[%s0 + $0x9c] sm:$0xf]
      %v376 = vld [vmem:[%s0 + $0xa0] sm:$0xf]
      %v377 = vld [vmem:[%s0 + $0xa4] sm:$0xf]
      %v378 = vld [vmem:[%s0 + $0xa8] sm:$0xf]
      %v379 = vld [vmem:[%s0 + $0xac] sm:$0xf]
      %v380 = vld [vmem:[%s0 + $0xb0] sm:$0xf]
      %v381 = vld [vmem:[%s0 + $0xb4] sm:$0xf]
      %v382 = vld [vmem:[%s0 + $0xb8] sm:$0xf]
      %v383 = vld [vmem:[%s0 + $0xbc] sm:$0xf]
      %v384 = vld [vmem:[%s0 + $0xc0] sm:$0xf]
      %v385 = vld [vmem:[%s0 + $0xc4] sm:$0xf]
      %v386 = vld [vmem:[%s0 + $0xc8] sm:$0xf]
      %v387 = vld [vmem:[%s0 + $0xcc] sm:$0xf]
      %v388 = vld [vmem:[%s0 + $0xd0] sm:$0xf]
      %v389 = vld [vmem:[%s0 + $0xd4] sm:$0xf]
      %v390 = vld [vmem:[%s0 + $0xd8] sm:$0xf]
      %v391 = vld [vmem:[%s0 + $0xdc] sm:$0xf]
      %v392 = vld [vmem:[%s0 + $0xe0] sm:$0xf]
      %v393 = vld [vmem:[%s0 + $0xe4] sm:$0xf]
      %v394 = vld [vmem:[%s0 + $0xe8] sm:$0xf]
      %v395 = vld [vmem:[%s0 + $0xec] sm:$0xf]
      %v396 = vld [vmem:[%s0 + $0xf0] sm:$0xf]
      %v397 = vld [vmem:[%s0 + $0xf4] sm:$0xf]
      %v398 = vld [vmem:[%s0 + $0xf8] sm:$0xf]
      %v399 = vld [vmem:[%s0 + $0xfc] sm:$0xf]
      %v400 = vld [vmem:[%s0 + $0x100] sm:$0xf]
      %v401 = vld [vmem:[%s0 + $0x104] sm:$0xf]
      %v402 = vld [vmem:[%s0 + $0x108] sm:$0xf]
      %v403 = vld [vmem:[%s0 + $0x10c] sm:$0xf]
      %v404 = vld [vmem:[%s0 + $0x110] sm:$0xf]
      %v405 = vld [vmem:[%s0 + $0x114] sm:$0xf]
      %v406 = vld [vmem:[%s0 + $0x118] sm:$0xf]
      %v407 = vld [vmem:[%s0 + $0x11c] sm:$0xf]
      %v408 = vld [vmem:[%s0 + $0x120] sm:$0xf]
      %v409 = vld [vmem:[%s0 + $0x124] sm:$0xf]
      %v410 = vld [vmem:[%s0 + $0x128] sm:$0xf]
      %v411 = vld [vmem:[%s0 + $0x12c] sm:$0xf]
      %v412 = vld [vmem:[%s0 + $0x130] sm:$0xf]
      %v413 = vld [vmem:[%s0 + $0x134] sm:$0xf]
      %v414 = vld [vmem:[%s0 + $0x138] sm:$0xf]
      %v415 = vld [vmem:[%s0 + $0x13c] sm:$0xf]
      %v416 = vld [vmem:[%s0 + $0x140] sm:$0xf]
      %v417 = vld [vmem:[%s0 + $0x144] sm:$0xf]
      %v418 = vld [vmem:[%s0 + $0x148] sm:$0xf]
      %v419 = vld [vmem:[%s0 + $0x14c] sm:$0xf]
      %v420 = vld [vmem:[%s0 + $0x150] sm:$0xf]
      %v421 = vld [vmem:[%s0 + $0x154] sm:$0xf]
      %v422 = vld [vmem:[%s0 + $0x158] sm:$0xf]
      %v423 = vld [vmem:[%s0 + $0x15c] sm:$0xf]
      %v424 = vld [vmem:[%s0 + $0x160] sm:$0xf]
      %v425 = vld [vmem:[%s0 + $0x164] sm:$0xf]
      %v426 = vld [vmem:[%s0 + $0x168] sm:$0xf]
      %v427 = vld [vmem:[%s0 + $0x16c] sm:$0xf]
      %v428 = vld [vmem:[%s0 + $0x170] sm:$0xf]
      %v429 = vld [vmem:[%s0 + $0x174] sm:$0xf]
      %v430 = vld [vmem:[%s0 + $0x178] sm:$0xf]
      %v431 = vld [vmem:[%s0 + $0x17c] sm:$0xf]
      %v432 = vld [vmem:[%s0 + $0x180] sm:$0xf]
      %v433 = vld [vmem:[%s0 + $0x184] sm:$0xf]
      %v434 = vld [vmem:[%s0 + $0x188] sm:$0xf]
      %v435 = vld [vmem:[%s0 + $0x18c] sm:$0xf]
      %v436 = vld [vmem:[%s0 + $0x190] sm:$0xf]
      %v437 = vld [vmem:[%s0 + $0x194] sm:$0xf]
      %v438 = vld [vmem:[%s0 + $0x198] sm:$0xf]
      %v439 = vld [vmem:[%s0 + $0x19c] sm:$0xf]
      %v440 = vld [vmem:[%s0 + $0x1a0] sm:$0xf]
      %v441 = vld [vmem:[%s0 + $0x1a4] sm:$0xf]
      %v442 = vld [vmem:[%s0 + $0x1a8] sm:$0xf]
      %v443 = vld [vmem:[%s0 + $0x1ac] sm:$0xf]
      %v444 = vld [vmem:[%s0 + $0x1b0] sm:$0xf]
      %v445 = vld [vmem:[%s0 + $0x1b4] sm:$0xf]
      %v446 = vld [vmem:[%s0 + $0x1b8] sm:$0xf]
      %v447 = vld [vmem:[%s0 + $0x1bc] sm:$0xf]
      %v448 = vld [vmem:[%s0 + $0x1c0] sm:$0xf]
      %v449 = vld [vmem:[%s0 + $0x1c4] sm:$0xf]
      %v450 = vld [vmem:[%s0 + $0x1c8] sm:$0xf]
      %v451 = vld [vmem:[%s0 + $0x1cc] sm:$0xf]
      %v452 = vld [vmem:[%s0 + $0x1d0] sm:$0xf]
      %v453 = vld [vmem:[%s0 + $0x1d4] sm:$0xf]
      %v454 = vld [vmem:[%s0 + $0x1d8] sm:$0xf]
      %v455 = vld [vmem:[%s0 + $0x1dc] sm:$0xf]
      %v456 = vld [vmem:[%s0 + $0x1e0] sm:$0xf]
      %v457 = vld [vmem:[%s0 + $0x1e4] sm:$0xf]
      %v458 = vld [vmem:[%s0 + $0x1e8] sm:$0xf]
      %v459 = vld [vmem:[%s0 + $0x1ec] sm:$0xf]
      %v460 = vld [vmem:[%s0 + $0x1f0] sm:$0xf]
      %v461 = vld [vmem:[%s0 + $0x1f4] sm:$0xf]
      %v462 = vld [vmem:[%s0 + $0x1f8] sm:$0xf]
      %v463 = vld [vmem:[%s0 + $0x1fc] sm:$0xf]
      %v592 = vunpack.c.l.b16 %v336
      %v593 = vunpack.c.l.b16 %v337
      %v594 = vunpack.c.l.b16 %v338
      %v595 = vunpack.c.l.b16 %v339
      %v596 = vunpack.c.l.b16 %v340
      %v597 = vunpack.c.l.b16 %v341
      %v598 = vunpack.c.l.b16 %v342
      %v599 = vunpack.c.l.b16 %v343
      %v600 = vunpack.c.l.b16 %v344
      %v601 = vunpack.c.l.b16 %v345
      %v602 = vunpack.c.l.b16 %v346
      %v603 = vunpack.c.l.b16 %v347
      %v604 = vunpack.c.l.b16 %v348
      %v605 = vunpack.c.l.b16 %v349
      %v606 = vunpack.c.l.b16 %v350
      %v607 = vunpack.c.l.b16 %v351
      %v608 = vunpack.c.l.b16 %v352
      %v609 = vunpack.c.l.b16 %v353
      %v610 = vunpack.c.l.b16 %v354
      %v611 = vunpack.c.l.b16 %v355
      %v612 = vunpack.c.l.b16 %v356
      %v613 = vunpack.c.l.b16 %v357
      %v614 = vunpack.c.l.b16 %v358
      %v615 = vunpack.c.l.b16 %v359
      %v616 = vunpack.c.l.b16 %v360
      %v617 = vunpack.c.l.b16 %v361
      %v618 = vunpack.c.l.b16 %v362
      %v619 = vunpack.c.l.b16 %v363
      %v620 = vunpack.c.l.b16 %v364
      %v621 = vunpack.c.l.b16 %v365
      %v622 = vunpack.c.l.b16 %v366
      %v623 = vunpack.c.l.b16 %v367
      %v624 = vunpack.c.l.b16 %v368
      %v625 = vunpack.c.l.b16 %v369
      %v626 = vunpack.c.l.b16 %v370
      %v627 = vunpack.c.l.b16 %v371
      %v628 = vunpack.c.l.b16 %v372
      %v629 = vunpack.c.l.b16 %v373
      %v630 = vunpack.c.l.b16 %v374
      %v631 = vunpack.c.l.b16 %v375
      %v632 = vunpack.c.l.b16 %v376
      %v633 = vunpack.c.l.b16 %v377
      %v634 = vunpack.c.l.b16 %v378
      %v635 = vunpack.c.l.b16 %v379
      %v636 = vunpack.c.l.b16 %v380
      %v637 = vunpack.c.l.b16 %v381
      %v638 = vunpack.c.l.b16 %v382
      %v639 = vunpack.c.l.b16 %v383
      %v640 = vunpack.c.l.b16 %v384
      %v641 = vunpack.c.l.b16 %v385
      %v642 = vunpack.c.l.b16 %v386
      %v643 = vunpack.c.l.b16 %v387
      %v644 = vunpack.c.l.b16 %v388
      %v645 = vunpack.c.l.b16 %v389
      %v646 = vunpack.c.l.b16 %v390
      %v647 = vunpack.c.l.b16 %v391
      %v648 = vunpack.c.l.b16 %v392
      %v649 = vunpack.c.l.b16 %v393
      %v650 = vunpack.c.l.b16 %v394
      %v651 = vunpack.c.l.b16 %v395
      %v652 = vunpack.c.l.b16 %v396
      %v653 = vunpack.c.l.b16 %v397
      %v654 = vunpack.c.l.b16 %v398
      %v655 = vunpack.c.l.b16 %v399
      %v656 = vunpack.c.l.b16 %v400
      %v657 = vunpack.c.l.b16 %v401
      %v658 = vunpack.c.l.b16 %v402
      %v659 = vunpack.c.l.b16 %v403
      %v660 = vunpack.c.l.b16 %v404
      %v661 = vunpack.c.l.b16 %v405
      %v662 = vunpack.c.l.b16 %v406
      %v663 = vunpack.c.l.b16 %v407
      %v664 = vunpack.c.l.b16 %v408
      %v665 = vunpack.c.l.b16 %v409
      %v666 = vunpack.c.l.b16 %v410
      %v667 = vunpack.c.l.b16 %v411
      %v668 = vunpack.c.l.b16 %v412
      %v669 = vunpack.c.l.b16 %v413
      %v670 = vunpack.c.l.b16 %v414
      %v671 = vunpack.c.l.b16 %v415
      %v672 = vunpack.c.l.b16 %v416
      %v673 = vunpack.c.l.b16 %v417
      %v674 = vunpack.c.l.b16 %v418
      %v675 = vunpack.c.l.b16 %v419
      %v676 = vunpack.c.l.b16 %v420
      %v677 = vunpack.c.l.b16 %v421
      %v678 = vunpack.c.l.b16 %v422
      %v679 = vunpack.c.l.b16 %v423
      %v680 = vunpack.c.l.b16 %v424
      %v681 = vunpack.c.l.b16 %v425
      %v682 = vunpack.c.l.b16 %v426
      %v683 = vunpack.c.l.b16 %v427
      %v684 = vunpack.c.l.b16 %v428
      %v685 = vunpack.c.l.b16 %v429
      %v686 = vunpack.c.l.b16 %v430
      %v687 = vunpack.c.l.b16 %v431
      %v688 = vunpack.c.l.b16 %v432
      %v689 = vunpack.c.l.b16 %v433
      %v690 = vunpack.c.l.b16 %v434
      %v691 = vunpack.c.l.b16 %v435
      %v692 = vunpack.c.l.b16 %v436
      %v693 = vunpack.c.l.b16 %v437
      %v694 = vunpack.c.l.b16 %v438
      %v695 = vunpack.c.l.b16 %v439
      %v696 = vunpack.c.l.b16 %v440
      %v697 = vunpack.c.l.b16 %v441
      %v698 = vunpack.c.l.b16 %v442
      %v699 = vunpack.c.l.b16 %v443
      %v700 = vunpack.c.l.b16 %v444
      %v701 = vunpack.c.l.b16 %v445
      %v702 = vunpack.c.l.b16 %v446
      %v703 = vunpack.c.l.b16 %v447
      %v704 = vunpack.c.l.b16 %v448
      %v705 = vunpack.c.l.b16 %v449
      %v706 = vunpack.c.l.b16 %v450
      %v707 = vunpack.c.l.b16 %v451
      %v708 = vunpack.c.l.b16 %v452
      %v709 = vunpack.c.l.b16 %v453
      %v710 = vunpack.c.l.b16 %v454
      %v711 = vunpack.c.l.b16 %v455
      %v712 = vunpack.c.l.b16 %v456
      %v713 = vunpack.c.l.b16 %v457
      %v714 = vunpack.c.l.b16 %v458
      %v715 = vunpack.c.l.b16 %v459
      %v716 = vunpack.c.l.b16 %v460
      %v717 = vunpack.c.l.b16 %v461
      %v718 = vunpack.c.l.b16 %v462
      %v719 = vunpack.c.l.b16 %v463
      %v720 = vpack.c.b16 %v593, %v592
      %v721 = vpack.c.b16 %v595, %v594
      %v722 = vpack.c.b16 %v597, %v596
      %v723 = vpack.c.b16 %v599, %v598
      %v724 = vpack.c.b16 %v601, %v600
      %v725 = vpack.c.b16 %v603, %v602
      %v726 = vpack.c.b16 %v605, %v604
      %v727 = vpack.c.b16 %v607, %v606
      %v728 = vpack.c.b16 %v609, %v608
      %v729 = vpack.c.b16 %v611, %v610
      %v730 = vpack.c.b16 %v613, %v612
      %v731 = vpack.c.b16 %v615, %v614
      %v732 = vpack.c.b16 %v617, %v616
      %v733 = vpack.c.b16 %v619, %v618
      %v734 = vpack.c.b16 %v621, %v620
      %v735 = vpack.c.b16 %v623, %v622
      %v736 = vpack.c.b16 %v625, %v624
      %v737 = vpack.c.b16 %v627, %v626
      %v738 = vpack.c.b16 %v629, %v628
      %v739 = vpack.c.b16 %v631, %v630
      %v740 = vpack.c.b16 %v633, %v632
      %v741 = vpack.c.b16 %v635, %v634
      %v742 = vpack.c.b16 %v637, %v636
      %v743 = vpack.c.b16 %v639, %v638
      %v744 = vpack.c.b16 %v641, %v640
      %v745 = vpack.c.b16 %v643, %v642
      %v746 = vpack.c.b16 %v645, %v644
      %v747 = vpack.c.b16 %v647, %v646
      %v748 = vpack.c.b16 %v649, %v648
      %v749 = vpack.c.b16 %v651, %v650
      %v750 = vpack.c.b16 %v653, %v652
      %v751 = vpack.c.b16 %v655, %v654
      %v752 = vpack.c.b16 %v657, %v656
      %v753 = vpack.c.b16 %v659, %v658
      %v754 = vpack.c.b16 %v661, %v660
      %v755 = vpack.c.b16 %v663, %v662
      %v756 = vpack.c.b16 %v665, %v664
      %v757 = vpack.c.b16 %v667, %v666
      %v758 = vpack.c.b16 %v669, %v668
      %v759 = vpack.c.b16 %v671, %v670
      %v760 = vpack.c.b16 %v673, %v672
      %v761 = vpack.c.b16 %v675, %v674
      %v762 = vpack.c.b16 %v677, %v676
      %v763 = vpack.c.b16 %v679, %v678
      %v764 = vpack.c.b16 %v681, %v680
      %v765 = vpack.c.b16 %v683, %v682
      %v766 = vpack.c.b16 %v685, %v684
      %v767 = vpack.c.b16 %v687, %v686
      %v768 = vpack.c.b16 %v689, %v688
      %v769 = vpack.c.b16 %v691, %v690
      %v770 = vpack.c.b16 %v693, %v692
      %v771 = vpack.c.b16 %v695, %v694
      %v772 = vpack.c.b16 %v697, %v696
      %v773 = vpack.c.b16 %v699, %v698
      %v774 = vpack.c.b16 %v701, %v700
      %v775 = vpack.c.b16 %v703, %v702
      %v776 = vpack.c.b16 %v705, %v704
      %v777 = vpack.c.b16 %v707, %v706
      %v778 = vpack.c.b16 %v709, %v708
      %v779 = vpack.c.b16 %v711, %v710
      %v780 = vpack.c.b16 %v713, %v712
      %v781 = vpack.c.b16 %v715, %v714
      %v782 = vpack.c.b16 %v717, %v716
      %v783 = vpack.c.b16 %v719, %v718
      %848 = vmatprep.subr.bf16.mxu0 0
      %849 = vmatpush1.bf16.msra.mxu0 %v720
      %850 = vmatprep.subr.bf16.mxu0 0
      %851 = vmatpush1.bf16.msra.mxu0 %v721
      %852 = vmatprep.subr.bf16.mxu0 0
      %853 = vmatpush1.bf16.msra.mxu0 %v722
      %854 = vmatprep.subr.bf16.mxu0 0
      %855 = vmatpush1.bf16.msra.mxu0 %v723
      %856 = vmatprep.subr.bf16.mxu0 0
      %857 = vmatpush1.bf16.msra.mxu0 %v724
      %858 = vmatprep.subr.bf16.mxu0 0
      %859 = vmatpush1.bf16.msra.mxu0 %v725
      %860 = vmatprep.subr.bf16.mxu0 0
      %861 = vmatpush1.bf16.msra.mxu0 %v726
      %862 = vmatprep.subr.bf16.mxu0 0
      %863 = vmatpush1.bf16.msra.mxu0 %v727
      %864 = vmatprep.subr.bf16.mxu0 0
      %865 = vmatpush1.bf16.msra.mxu0 %v728
      %866 = vmatprep.subr.bf16.mxu0 0
      %867 = vmatpush1.bf16.msra.mxu0 %v729
      %868 = vmatprep.subr.bf16.mxu0 0
      %869 = vmatpush1.bf16.msra.mxu0 %v730
      %870 = vmatprep.subr.bf16.mxu0 0
      %871 = vmatpush1.bf16.msra.mxu0 %v731
      %872 = vmatprep.subr.bf16.mxu0 0
      %873 = vmatpush1.bf16.msra.mxu0 %v732
      %874 = vmatprep.subr.bf16.mxu0 0
      %875 = vmatpush1.bf16.msra.mxu0 %v733
      %876 = vmatprep.subr.bf16.mxu0 0
      %877 = vmatpush1.bf16.msra.mxu0 %v734
      %878 = vmatprep.subr.bf16.mxu0 0
      %879 = vmatpush1.bf16.msra.mxu0 %v735
      %880 = vmatprep.mubr.bf16.mxu0 %v278
      %881 = vmatmul.mubr.bf16.gmra.mrb[0].mxu0 %v274
      %v882 = vpop.f32.mrb[0].mxu0
      %v883 = vadd.f32 0.0, %v882
      %v884 = vpop.f32.mrb[0].mxu0
      %v885 = vpop.f32.mrb[0].mxu0
      %v886 = vadd.f32 0.0, %v885
      %v887 = vpop.f32.mrb[0].mxu0
      %888 = vmatprep.mubr.bf16.mxu0 %v310
      %889 = vmatmul.mubr.bf16.gmra.mrb[0].mxu0 %v306
      %v890 = vpop.f32.mrb[0].mxu0
      %v891 = vadd.f32 0.0, %v890
      %v892 = vpop.f32.mrb[0].mxu0
      %v893 = vpop.f32.mrb[0].mxu0
      %v894 = vadd.f32 0.0, %v893
      %v895 = vpop.f32.mrb[0].mxu0
      %896 = vdwg.mxu0
      %897 = vmatprep.subr.bf16.mxu0 0
      %898 = vmatpush1.bf16.msra.mxu0 %v736
      %899 = vmatprep.subr.bf16.mxu0 0
      %900 = vmatpush1.bf16.msra.mxu0 %v737
      %901 = vmatprep.subr.bf16.mxu0 0
      %902 = vmatpush1.bf16.msra.mxu0 %v738
      %903 = vmatprep.subr.bf16.mxu0 0
      %904 = vmatpush1.bf16.msra.mxu0 %v739
      %905 = vmatprep.subr.bf16.mxu0 0
      %906 = vmatpush1.bf16.msra.mxu0 %v740
      %907 = vmatprep.subr.bf16.mxu0 0
      %908 = vmatpush1.bf16.msra.mxu0 %v741
      %909 = vmatprep.subr.bf16.mxu0 0
      %910 = vmatpush1.bf16.msra.mxu0 %v742
      %911 = vmatprep.subr.bf16.mxu0 0
      %912 = vmatpush1.bf16.msra.mxu0 %v743
      %913 = vmatprep.subr.bf16.mxu0 0
      %914 = vmatpush1.bf16.msra.mxu0 %v744
      %915 = vmatprep.subr.bf16.mxu0 0
      %916 = vmatpush1.bf16.msra.mxu0 %v745
      %917 = vmatprep.subr.bf16.mxu0 0
      %918 = vmatpush1.bf16.msra.mxu0 %v746
      %919 = vmatprep.subr.bf16.mxu0 0
      %920 = vmatpush1.bf16.msra.mxu0 %v747
      %921 = vmatprep.subr.bf16.mxu0 0
      %922 = vmatpush1.bf16.msra.mxu0 %v748
      %923 = vmatprep.subr.bf16.mxu0 0
      %924 = vmatpush1.bf16.msra.mxu0 %v749
      %925 = vmatprep.subr.bf16.mxu0 0
      %926 = vmatpush1.bf16.msra.mxu0 %v750
      %927 = vmatprep.subr.bf16.mxu0 0
      %928 = vmatpush1.bf16.msra.mxu0 %v751
      %929 = vmatprep.mubr.bf16.mxu0 %v286
      %930 = vmatmul.mubr.bf16.gmra.mrb[0].mxu0 %v282
      %v931 = vpop.f32.mrb[0].mxu0
      %v932 = vadd.f32 %v883, %v931
      %v933 = vpop.f32.mrb[0].mxu0
      %v934 = vpop.f32.mrb[0].mxu0
      %v935 = vadd.f32 %v886, %v934
      %v936 = vpop.f32.mrb[0].mxu0
      %937 = vmatprep.mubr.bf16.mxu0 %v318
      %938 = vmatmul.mubr.bf16.gmra.mrb[0].mxu0 %v314
      %v939 = vpop.f32.mrb[0].mxu0
      %v940 = vadd.f32 %v891, %v939
      %v941 = vpop.f32.mrb[0].mxu0
      %v942 = vpop.f32.mrb[0].mxu0
      %v943 = vadd.f32 %v894, %v942
      %v944 = vpop.f32.mrb[0].mxu0
      %945 = vdwg.mxu0
      %946 = vmatprep.subr.bf16.mxu0 0
      %947 = vmatpush1.bf16.msra.mxu0 %v752
      %948 = vmatprep.subr.bf16.mxu0 0
      %949 = vmatpush1.bf16.msra.mxu0 %v753
      %950 = vmatprep.subr.bf16.mxu0 0
      %951 = vmatpush1.bf16.msra.mxu0 %v754
      %952 = vmatprep.subr.bf16.mxu0 0
      %953 = vmatpush1.bf16.msra.mxu0 %v755
      %954 = vmatprep.subr.bf16.mxu0 0
      %955 = vmatpush1.bf16.msra.mxu0 %v756
      %956 = vmatprep.subr.bf16.mxu0 0
      %957 = vmatpush1.bf16.msra.mxu0 %v757
      %958 = vmatprep.subr.bf16.mxu0 0
      %959 = vmatpush1.bf16.msra.mxu0 %v758
      %960 = vmatprep.subr.bf16.mxu0 0
      %961 = vmatpush1.bf16.msra.mxu0 %v759
      %962 = vmatprep.subr.bf16.mxu0 0
      %963 = vmatpush1.bf16.msra.mxu0 %v760
      %964 = vmatprep.subr.bf16.mxu0 0
      %965 = vmatpush1.bf16.msra.mxu0 %v761
      %966 = vmatprep.subr.bf16.mxu0 0
      %967 = vmatpush1.bf16.msra.mxu0 %v762
      %968 = vmatprep.subr.bf16.mxu0 0
      %969 = vmatpush1.bf16.msra.mxu0 %v763
      %970 = vmatprep.subr.bf16.mxu0 0
      %971 = vmatpush1.bf16.msra.mxu0 %v764
      %972 = vmatprep.subr.bf16.mxu0 0
      %973 = vmatpush1.bf16.msra.mxu0 %v765
      %974 = vmatprep.subr.bf16.mxu0 0
      %975 = vmatpush1.bf16.msra.mxu0 %v766
      %976 = vmatprep.subr.bf16.mxu0 0
      %977 = vmatpush1.bf16.msra.mxu0 %v767
      %978 = vmatprep.mubr.bf16.mxu0 %v294
      %979 = vmatmul.mubr.bf16.gmra.mrb[0].mxu0 %v290
      %v980 = vpop.f32.mrb[0].mxu0
      %v981 = vadd.f32 %v932, %v980
      %v982 = vpop.f32.mrb[0].mxu0
      %v983 = vpop.f32.mrb[0].mxu0
      %v984 = vadd.f32 %v935, %v983
      %v985 = vpop.f32.mrb[0].mxu0
      %986 = vmatprep.mubr.bf16.mxu0 %v326
      %987 = vmatmul.mubr.bf16.gmra.mrb[0].mxu0 %v322
      %v988 = vpop.f32.mrb[0].mxu0
      %v989 = vadd.f32 %v940, %v988
      %v990 = vpop.f32.mrb[0].mxu0
      %v991 = vpop.f32.mrb[0].mxu0
      %v992 = vadd.f32 %v943, %v991
      %v993 = vpop.f32.mrb[0].mxu0
      %994 = vdwg.mxu0
      %995 = vmatprep.subr.bf16.mxu0 0
      %996 = vmatpush1.bf16.msra.mxu0 %v768
      %997 = vmatprep.subr.bf16.mxu0 0
      %998 = vmatpush1.bf16.msra.mxu0 %v769
      %999 = vmatprep.subr.bf16.mxu0 0
      %1000 = vmatpush1.bf16.msra.mxu0 %v770
      %1001 = vmatprep.subr.bf16.mxu0 0
      %1002 = vmatpush1.bf16.msra.mxu0 %v771
      %1003 = vmatprep.subr.bf16.mxu0 0
      %1004 = vmatpush1.bf16.msra.mxu0 %v772
      %1005 = vmatprep.subr.bf16.mxu0 0
      %1006 = vmatpush1.bf16.msra.mxu0 %v773
      %1007 = vmatprep.subr.bf16.mxu0 0
      %1008 = vmatpush1.bf16.msra.mxu0 %v774
      %1009 = vmatprep.subr.bf16.mxu0 0
      %1010 = vmatpush1.bf16.msra.mxu0 %v775
      %1011 = vmatprep.subr.bf16.mxu0 0
      %1012 = vmatpush1.bf16.msra.mxu0 %v776
      %1013 = vmatprep.subr.bf16.mxu0 0
      %1014 = vmatpush1.bf16.msra.mxu0 %v777
      %1015 = vmatprep.subr.bf16.mxu0 0
      %1016 = vmatpush1.bf16.msra.mxu0 %v778
      %1017 = vmatprep.subr.bf16.mxu0 0
      %1018 = vmatpush1.bf16.msra.mxu0 %v779
      %1019 = vmatprep.subr.bf16.mxu0 0
      %1020 = vmatpush1.bf16.msra.mxu0 %v780
      %1021 = vmatprep.subr.bf16.mxu0 0
      %1022 = vmatpush1.bf16.msra.mxu0 %v781
      %1023 = vmatprep.subr.bf16.mxu0 0
      %1024 = vmatpush1.bf16.msra.mxu0 %v782
      %1025 = vmatprep.subr.bf16.mxu0 0
      %1026 = vmatpush1.bf16.msra.mxu0 %v783
      %1027 = vmatprep.mubr.bf16.mxu0 %v302
      %1028 = vmatmul.mubr.bf16.gmra.mrb[0].mxu0 %v298
      %v1029 = vpop.f32.mrb[0].mxu0
      %v1030 = vadd.f32 %v981, %v1029
      %v1031 = vpop.f32.mrb[0].mxu0
      %v1032 = vpop.f32.mrb[0].mxu0
      %v1033 = vadd.f32 %v984, %v1032
      %v1034 = vpop.f32.mrb[0].mxu0
      %1035 = vmatprep.mubr.bf16.mxu0 %v334
      %1036 = vmatmul.mubr.bf16.gmra.mrb[0].mxu0 %v330
      %v1037 = vpop.f32.mrb[0].mxu0
      %v1038 = vadd.f32 %v989, %v1037
      %v1039 = vpop.f32.mrb[0].mxu0
      %v1040 = vpop.f32.mrb[0].mxu0
      %v1041 = vadd.f32 %v992, %v1040
      %v1042 = vpop.f32.mrb[0].mxu0
      %1043 = vdwg.mxu0
      %v1044 = vadd.f32 %v1030, %v1033
      %v1045 = vadd.f32 %v1038, %v1041
      %v1046 = vrcp.pop %v1045
      %v1047 = vmul.f32 %v1044, %v1046
      %1048 = vst [vmem:[%s141] sm:$0xff] %v1047
      %p1049 = scmp.lt.s32.totalorder %s13, 1
      %s1050 = scalar_select %p1049, %s13, 1
      %s1051 = smul.addr %s1050, 8
      %s1052 = scalar_lea.vmem %s2, %s1051
      // Predicated region
      $region29: #{softpool3d.1} parent=27 // pred_check
        %p1053 = pneg %p78
      $region30: #{softpool3d.1} parent=27 // pred_check_branch
        %1055 = sbr.rel (%p1053) target = $region32
      $region31: #{softpool3d.1} parent=27 // pred_region
        _
      $region32: #{softpool3d.1} parent=27 // pred_fallthru
        _
    $region28: #{softpool3d.1} parent=5 // pred_fallthru
      _
    %p1056 = scmp.le.s32.totalorder 2, %s8
    // Predicated region
    $region33: #{softpool3d.1} parent=5 // pred_check
      %p1057 = pneg %p1056
    $region34: #{softpool3d.1} parent=5 // pred_check_branch
      %1059 = sbr.rel (%p1057) target = $region36
    $region35: #{softpool3d.1} parent=5 // pred_region
      %s1060 = ssub.s32 %s8, 2
      // Predicated region
      $region37: #{softpool3d.1} parent=35 // pred_check
        %p1061 = pneg %p84
      $region38: #{softpool3d.1} parent=35 // pred_check_branch
        %1063 = sbr.rel (%p1061) target = $region40
      $region39: #{softpool3d.1} parent=35 // pred_region
        %p1064 = scmp.lt.s32.totalorder %s14, 1
        %s1065 = scalar_select %p1064, %s14, 1
        %s1066 = smul.addr %s1065, 8
        %s1067 = scalar_lea.vmem %s2, %s1066
      $region40: #{softpool3d.1} parent=35 // pred_fallthru
        _
    $region36: #{softpool3d.1} parent=5 // pred_fallthru
      _
  $region6: #{softpool3d.1} parent=0 // loop_footer
    %s12 = sadd.s32 1, %s8
  $region7: #{softpool3d.1} parent=0 // loop_footer_branch
    %7 = sbr.rel target = $region3
  $region8: #{softpool3d.1} parent=0 // loop_exit
    _

</llo_original>
